<compile_context>
chip_gen: v7x
topology: tpu7x:2x2x1
jax: 0.10.0
libtpu: 0.0.40
codegen_flags: <defaults>
</compile_context>

<pallas_src>
import functools
import math

import jax
import jax.numpy as jnp
from jax import lax
from jax.experimental import pallas as pl
from jax.experimental.pallas import tpu as pltpu

# ---- model hyperparameters (small, consistent with GMapping defaults) ----
LATENT_SIZE = 128          # latent (Z) dim == mapping_fmaps == dlatent_size here
MAPPING_LAYERS = 8
MAPPING_LRMUL = 0.01
DLATENT_BROADCAST = 4      # exercise the broadcast branch
NORMALIZE_LATENTS = True
LRELU_SLOPE = 0.2

BATCH = 16
MAX_BATCH_TILE = 128       # <=128: v5e MXU is 128 rows; B>=256 -> >=2 grid steps (v7x TCs)


def _round_up(x, m):
    return (x + m - 1) // m * m


def _default_act_dtype():
    """Elementwise dtype: bf16 on v6e/v7x (bf16 VPU/EUP), f32 on v5e/unknown."""
    try:
        kind = jax.devices()[0].device_kind.lower()
    except Exception:
        return jnp.float32
    if ("v6" in kind) or ("v7" in kind):
        return jnp.bfloat16
    return jnp.float32


def _gmapping_kernel(x_ref, w_ref, b_ref, o_ref, *, num_layers, normalize, slope):
    # x_ref: (TILE, D)        current batch tile (ragged last tile: garbage rows are
    #                         row-independent and their output writes are masked)
    # w_ref: (L, D, D) bf16   stacked weights, pre-scaled by w_mul, (in, out) layout,
    #                         whole stack resident in VMEM (not pipelined per step)
    # b_ref: (L, 1, D)        stacked biases, pre-scaled by lrmul; dtype == elementwise dtype
    # o_ref: (TILE, D)
    act_dtype = b_ref.dtype

    # Pixel-norm in f32 (rsqrt -> EUP, lane-axis mean -> XLU).
    h = x_ref[...].astype(jnp.float32)
    if normalize:
        h = h * lax.rsqrt(jnp.mean(h * h, axis=1, keepdims=True) + 1e-8)

    # One cast to the elementwise dtype (bf16 on v6e/v7x, f32 on v5e).
    h = h.astype(act_dtype)

    for layer in range(num_layers):          # static unroll (num_layers is small)
        lhs = h if h.dtype == jnp.bfloat16 else h.astype(jnp.bfloat16)
        # bf16 operands, f32 accumulation on the MXU.
        y = jnp.dot(lhs, w_ref[layer], preferred_element_type=jnp.float32)
        y = y.astype(act_dtype) + b_ref[layer]
        h = jnp.maximum(y, slope * y)        # leaky ReLU(0.2): one vmul + one vmax

    o_ref[...] = h.astype(o_ref.dtype)


def prepare_params(weights, biases, *, lrmul=MAPPING_LRMUL, act_dtype=None):
    """Fold the equalized-LR scales into the params once (amortized across calls)."""
    if act_dtype is None:
        act_dtype = _default_act_dtype()
    fan_in = weights.shape[1]
    w_mul = (math.sqrt(2.0) / math.sqrt(fan_in)) * lrmul  # he_std * lrmul (use_wscale)
    w_scaled = (weights * w_mul).astype(jnp.bfloat16)     # bf16 MXU operands
    b_scaled = (biases * lrmul).astype(act_dtype)         # elementwise dtype
    return w_scaled, b_scaled


def gmapping_forward(x, w_scaled, b_scaled, *,
                     normalize_latents=NORMALIZE_LATENTS,
                     dlatent_broadcast=DLATENT_BROADCAST,
                     out_dtype=jnp.float32,
                     batch_tile=None):
    """x: [B, D]. w_scaled: [L, D, D] bf16 (pre-scaled). b_scaled: [L, 1, D]."""
    B, D = x.shape
    L, D_in, D_out = w_scaled.shape
    assert D == D_in

    if batch_tile is None:
        # Multiple of 16 (bf16 row packing), capped at 128 so large batches always
        # produce >=2 grid steps (v7x megacore) and v5e's MXU rows are exactly filled.
        batch_tile = min(_round_up(B, 16), MAX_BATCH_TILE)

    grid = (pl.cdiv(B, batch_tile),)   # ragged last block handled by Pallas; no jnp.pad

    kernel = functools.partial(
        _gmapping_kernel, num_layers=L,
        normalize=normalize_latents, slope=LRELU_SLOPE)

    out = pl.pallas_call(
        kernel,
        out_shape=jax.ShapeDtypeStruct((B, D_out), out_dtype),
        grid_spec=pltpu.PrefetchScalarGridSpec(
            num_scalar_prefetch=0,
            grid=grid,
            in_specs=[
                pl.BlockSpec((batch_tile, D_in), lambda i: (i, 0)),
                # Invariant params: whole stacks resident in VMEM once
                # (no per-grid-step pipelining / double-buffering, no layer grid axis).
                pl.BlockSpec(memory_space=pltpu.MemorySpace.VMEM),
                pl.BlockSpec(memory_space=pltpu.MemorySpace.VMEM),
            ],
            out_specs=pl.BlockSpec((batch_tile, D_out), lambda i: (i, 0)),
        ),
        compiler_params=pltpu.CompilerParams(
            dimension_semantics=("parallel",)),
    )(x, w_scaled, b_scaled)

    if dlatent_broadcast is not None:
        # glue: [B, D] -> [B, dlatent_broadcast, D] (lazy, no extra HBM writeback)
        out = jnp.broadcast_to(out[:, None, :], (B, dlatent_broadcast, D_out))
    return out


def gmapping_reference(x, weights, biases, *, lrmul=MAPPING_LRMUL,
                       normalize_latents=NORMALIZE_LATENTS,
                       dlatent_broadcast=DLATENT_BROADCAST):
    """Pure-JAX f32 reference mirroring the PyTorch forward."""
    D = x.shape[1]
    w_mul = (math.sqrt(2.0) / math.sqrt(D)) * lrmul
    h = x.astype(jnp.float32)
    if normalize_latents:
        h = h * lax.rsqrt(jnp.mean(h * h, axis=1, keepdims=True) + 1e-8)
    for layer in range(weights.shape[0]):
        y = h @ (weights[layer] * w_mul) + biases[layer, 0] * lrmul
        h = jnp.where(y >= 0.0, y, LRELU_SLOPE * y)
    if dlatent_broadcast is not None:
        h = jnp.broadcast_to(h[:, None, :], (h.shape[0], dlatent_broadcast, D))
    return h


def init_params(key, num_layers=MAPPING_LAYERS, dim=LATENT_SIZE,
                lrmul=MAPPING_LRMUL):
    """EqualizedLinear init (use_wscale=True): W ~ N(0, 1/lrmul), b = 0."""
    init_std = 1.0 / lrmul
    # PyTorch weight is [out, in]; we store transposed [in, out] per layer.
    weights = jax.random.normal(key, (num_layers, dim, dim), jnp.float32) * init_std
    biases = jnp.zeros((num_layers, 1, dim), jnp.float32)
    return weights, biases


def _check(out, ref):
    out = out.astype(jnp.float32)
    ref = ref.astype(jnp.float32)
    max_abs = float(jnp.max(jnp.abs(out - ref)))
    rel_l2 = float(jnp.linalg.norm(out - ref) / (jnp.linalg.norm(ref) + 1e-12))
    # 8 stacked matmuls with bf16 operands (f32 accumulation): a few percent of the
    # O(1) activation scale is the expected drift vs. the f32 reference.
    assert max_abs < 1.5e-1, (max_abs, rel_l2)
    assert rel_l2 < 5e-2, (max_abs, rel_l2)


if __name__ == "__main__":
    key = jax.random.PRNGKey(0)
    kx, kw, kx2 = jax.random.split(key, 3)

    weights, biases = init_params(kw)
    w_scaled, b_scaled = prepare_params(weights, biases)

    # Case 1: small batch with dlatent broadcast (grid of 1 step, 16-row tile).
    x = jax.random.normal(kx, (BATCH, LATENT_SIZE), jnp.float32)
    out = gmapping_forward(x, w_scaled, b_scaled,
                           normalize_latents=NORMALIZE_LATENTS,
                           dlatent_broadcast=DLATENT_BROADCAST)
    out = jax.block_until_ready(out)
    assert out.shape == (BATCH, DLATENT_BROADCAST, LATENT_SIZE), out.shape
    ref = gmapping_reference(x, weights, biases)
    _check(out, ref)

    # Case 2: batch that is not a tile multiple -> 2 grid steps with a ragged last
    # block (no jnp.pad of x, no wasted full tiles, output written only for valid rows).
    x2 = jax.random.normal(kx2, (160, LATENT_SIZE), jnp.float32)
    out2 = jax.block_until_ready(
        gmapping_forward(x2, w_scaled, b_scaled, dlatent_broadcast=None))
    assert out2.shape == (160, LATENT_SIZE), out2.shape
    ref2 = gmapping_reference(x2, weights, biases, dlatent_broadcast=None)
    _check(out2, ref2)

    print("KERNEL_OK")
</pallas_src>

<mosaic_0001>
module attributes {stable_mosaic.version = 11 : i64} {
  func.func @_gmapping_kernel(%arg0: i32, %arg1: memref<16x128xf32, #tpu.memory_space<vmem>>, %arg2: memref<8x128x128xbf16, #tpu.memory_space<vmem>>, %arg3: memref<8x1x128xf32, #tpu.memory_space<vmem>>, %arg4: memref<16x128xf32, #tpu.memory_space<vmem>>) attributes {dimension_semantics = [#tpu.dimension_semantics<parallel>], iteration_bounds = array<i64: 1>, scalar_prefetch = 0 : i64, scratch_operands = 0 : i64, tpu.core_type = #tpu.core_type<tc>, window_params = [{transform_indices = @transform_0, window_bounds = array<i64: 16, 128>}, {pipeline_mode = #tpu.pipeline_mode<synchronous>, transform_indices = @transform_1, window_bounds = array<i64: 8, 128, 128>}, {pipeline_mode = #tpu.pipeline_mode<synchronous>, transform_indices = @transform_2, window_bounds = array<i64: 8, 1, 128>}, {transform_indices = @transform_3, window_bounds = array<i64: 16, 128>}]} {
    %c0 = arith.constant 0 : index
    %c0_0 = arith.constant 0 : index
    %0 = vector.load %arg1[%c0, %c0_0] : memref<16x128xf32, #tpu.memory_space<vmem>>, vector<16x128xf32>
    %1 = arith.mulf %0, %0 : vector<16x128xf32>
    %cst = arith.constant dense<0.000000e+00> : vector<16xf32>
    %2 = vector.multi_reduction <add>, %1, %cst [1] : vector<16x128xf32> to vector<16xf32>
    %3 = vector.shape_cast %2 : vector<16xf32> to vector<16x1xf32>
    %cst_1 = arith.constant 1.280000e+02 : f32
    %4 = vector.broadcast %cst_1 : f32 to vector<16x1xf32>
    %5 = arith.divf %3, %4 : vector<16x1xf32>
    %cst_2 = arith.constant 9.99999993E-9 : f32
    %6 = vector.broadcast %cst_2 : f32 to vector<16x1xf32>
    %7 = arith.addf %5, %6 : vector<16x1xf32>
    %8 = math.rsqrt %7 : vector<16x1xf32>
    %9 = vector.broadcast %8 : vector<16x1xf32> to vector<16x128xf32>
    %10 = arith.mulf %0, %9 : vector<16x128xf32>
    %11 = arith.truncf %10 : vector<16x128xf32> to vector<16x128xbf16>
    %c0_3 = arith.constant 0 : index
    %c0_4 = arith.constant 0 : index
    %c0_5 = arith.constant 0 : index
    %12 = vector.load %arg2[%c0_3, %c0_4, %c0_5] : memref<8x128x128xbf16, #tpu.memory_space<vmem>>, vector<1x128x128xbf16>
    %13 = vector.shape_cast %12 : vector<1x128x128xbf16> to vector<128x128xbf16>
    %cst_6 = arith.constant dense<0.000000e+00> : vector<16x128xf32>
    %14 = tpu.matmul %11, %13, %cst_6 {dimension_numbers = #tpu.dot_dimension_numbers<[1], [0], [0], [1], [0, 0, 1, 1], [], []>} : vector<16x128xbf16>, vector<128x128xbf16>, vector<16x128xf32> -> vector<16x128xf32>
    %c0_7 = arith.constant 0 : index
    %c0_8 = arith.constant 0 : index
    %c0_9 = arith.constant 0 : index
    %15 = vector.load %arg3[%c0_7, %c0_8, %c0_9] : memref<8x1x128xf32, #tpu.memory_space<vmem>>, vector<1x1x128xf32>
    %16 = vector.shape_cast %15 : vector<1x1x128xf32> to vector<1x128xf32>
    %17 = vector.broadcast %16 : vector<1x128xf32> to vector<16x128xf32>
    %18 = arith.addf %14, %17 : vector<16x128xf32>
    %cst_10 = arith.constant 2.000000e-01 : f32
    %19 = vector.broadcast %cst_10 : f32 to vector<16x128xf32>
    %20 = arith.mulf %19, %18 : vector<16x128xf32>
    %21 = arith.maximumf %18, %20 : vector<16x128xf32>
    %22 = arith.truncf %21 : vector<16x128xf32> to vector<16x128xbf16>
    %c1 = arith.constant 1 : index
    %c0_11 = arith.constant 0 : index
    %c0_12 = arith.constant 0 : index
    %23 = vector.load %arg2[%c1, %c0_11, %c0_12] : memref<8x128x128xbf16, #tpu.memory_space<vmem>>, vector<1x128x128xbf16>
    %24 = vector.shape_cast %23 : vector<1x128x128xbf16> to vector<128x128xbf16>
    %cst_13 = arith.constant dense<0.000000e+00> : vector<16x128xf32>
    %25 = tpu.matmul %22, %24, %cst_13 {dimension_numbers = #tpu.dot_dimension_numbers<[1], [0], [0], [1], [0, 0, 1, 1], [], []>} : vector<16x128xbf16>, vector<128x128xbf16>, vector<16x128xf32> -> vector<16x128xf32>
    %c1_14 = arith.constant 1 : index
    %c0_15 = arith.constant 0 : index
    %c0_16 = arith.constant 0 : index
    %26 = vector.load %arg3[%c1_14, %c0_15, %c0_16] : memref<8x1x128xf32, #tpu.memory_space<vmem>>, vector<1x1x128xf32>
    %27 = vector.shape_cast %26 : vector<1x1x128xf32> to vector<1x128xf32>
    %28 = vector.broadcast %27 : vector<1x128xf32> to vector<16x128xf32>
    %29 = arith.addf %25, %28 : vector<16x128xf32>
    %cst_17 = arith.constant 2.000000e-01 : f32
    %30 = vector.broadcast %cst_17 : f32 to vector<16x128xf32>
    %31 = arith.mulf %30, %29 : vector<16x128xf32>
    %32 = arith.maximumf %29, %31 : vector<16x128xf32>
    %33 = arith.truncf %32 : vector<16x128xf32> to vector<16x128xbf16>
    %c2 = arith.constant 2 : index
    %c0_18 = arith.constant 0 : index
    %c0_19 = arith.constant 0 : index
    %34 = vector.load %arg2[%c2, %c0_18, %c0_19] : memref<8x128x128xbf16, #tpu.memory_space<vmem>>, vector<1x128x128xbf16>
    %35 = vector.shape_cast %34 : vector<1x128x128xbf16> to vector<128x128xbf16>
    %cst_20 = arith.constant dense<0.000000e+00> : vector<16x128xf32>
    %36 = tpu.matmul %33, %35, %cst_20 {dimension_numbers = #tpu.dot_dimension_numbers<[1], [0], [0], [1], [0, 0, 1, 1], [], []>} : vector<16x128xbf16>, vector<128x128xbf16>, vector<16x128xf32> -> vector<16x128xf32>
    %c2_21 = arith.constant 2 : index
    %c0_22 = arith.constant 0 : index
    %c0_23 = arith.constant 0 : index
    %37 = vector.load %arg3[%c2_21, %c0_22, %c0_23] : memref<8x1x128xf32, #tpu.memory_space<vmem>>, vector<1x1x128xf32>
    %38 = vector.shape_cast %37 : vector<1x1x128xf32> to vector<1x128xf32>
    %39 = vector.broadcast %38 : vector<1x128xf32> to vector<16x128xf32>
    %40 = arith.addf %36, %39 : vector<16x128xf32>
    %cst_24 = arith.constant 2.000000e-01 : f32
    %41 = vector.broadcast %cst_24 : f32 to vector<16x128xf32>
    %42 = arith.mulf %41, %40 : vector<16x128xf32>
    %43 = arith.maximumf %40, %42 : vector<16x128xf32>
    %44 = arith.truncf %43 : vector<16x128xf32> to vector<16x128xbf16>
    %c3 = arith.constant 3 : index
    %c0_25 = arith.constant 0 : index
    %c0_26 = arith.constant 0 : index
    %45 = vector.load %arg2[%c3, %c0_25, %c0_26] : memref<8x128x128xbf16, #tpu.memory_space<vmem>>, vector<1x128x128xbf16>
    %46 = vector.shape_cast %45 : vector<1x128x128xbf16> to vector<128x128xbf16>
    %cst_27 = arith.constant dense<0.000000e+00> : vector<16x128xf32>
    %47 = tpu.matmul %44, %46, %cst_27 {dimension_numbers = #tpu.dot_dimension_numbers<[1], [0], [0], [1], [0, 0, 1, 1], [], []>} : vector<16x128xbf16>, vector<128x128xbf16>, vector<16x128xf32> -> vector<16x128xf32>
    %c3_28 = arith.constant 3 : index
    %c0_29 = arith.constant 0 : index
    %c0_30 = arith.constant 0 : index
    %48 = vector.load %arg3[%c3_28, %c0_29, %c0_30] : memref<8x1x128xf32, #tpu.memory_space<vmem>>, vector<1x1x128xf32>
    %49 = vector.shape_cast %48 : vector<1x1x128xf32> to vector<1x128xf32>
    %50 = vector.broadcast %49 : vector<1x128xf32> to vector<16x128xf32>
    %51 = arith.addf %47, %50 : vector<16x128xf32>
    %cst_31 = arith.constant 2.000000e-01 : f32
    %52 = vector.broadcast %cst_31 : f32 to vector<16x128xf32>
    %53 = arith.mulf %52, %51 : vector<16x128xf32>
    %54 = arith.maximumf %51, %53 : vector<16x128xf32>
    %55 = arith.truncf %54 : vector<16x128xf32> to vector<16x128xbf16>
    %c4 = arith.constant 4 : index
    %c0_32 = arith.constant 0 : index
    %c0_33 = arith.constant 0 : index
    %56 = vector.load %arg2[%c4, %c0_32, %c0_33] : memref<8x128x128xbf16, #tpu.memory_space<vmem>>, vector<1x128x128xbf16>
    %57 = vector.shape_cast %56 : vector<1x128x128xbf16> to vector<128x128xbf16>
    %cst_34 = arith.constant dense<0.000000e+00> : vector<16x128xf32>
    %58 = tpu.matmul %55, %57, %cst_34 {dimension_numbers = #tpu.dot_dimension_numbers<[1], [0], [0], [1], [0, 0, 1, 1], [], []>} : vector<16x128xbf16>, vector<128x128xbf16>, vector<16x128xf32> -> vector<16x128xf32>
    %c4_35 = arith.constant 4 : index
    %c0_36 = arith.constant 0 : index
    %c0_37 = arith.constant 0 : index
    %59 = vector.load %arg3[%c4_35, %c0_36, %c0_37] : memref<8x1x128xf32, #tpu.memory_space<vmem>>, vector<1x1x128xf32>
    %60 = vector.shape_cast %59 : vector<1x1x128xf32> to vector<1x128xf32>
    %61 = vector.broadcast %60 : vector<1x128xf32> to vector<16x128xf32>
    %62 = arith.addf %58, %61 : vector<16x128xf32>
    %cst_38 = arith.constant 2.000000e-01 : f32
    %63 = vector.broadcast %cst_38 : f32 to vector<16x128xf32>
    %64 = arith.mulf %63, %62 : vector<16x128xf32>
    %65 = arith.maximumf %62, %64 : vector<16x128xf32>
    %66 = arith.truncf %65 : vector<16x128xf32> to vector<16x128xbf16>
    %c5 = arith.constant 5 : index
    %c0_39 = arith.constant 0 : index
    %c0_40 = arith.constant 0 : index
    %67 = vector.load %arg2[%c5, %c0_39, %c0_40] : memref<8x128x128xbf16, #tpu.memory_space<vmem>>, vector<1x128x128xbf16>
    %68 = vector.shape_cast %67 : vector<1x128x128xbf16> to vector<128x128xbf16>
    %cst_41 = arith.constant dense<0.000000e+00> : vector<16x128xf32>
    %69 = tpu.matmul %66, %68, %cst_41 {dimension_numbers = #tpu.dot_dimension_numbers<[1], [0], [0], [1], [0, 0, 1, 1], [], []>} : vector<16x128xbf16>, vector<128x128xbf16>, vector<16x128xf32> -> vector<16x128xf32>
    %c5_42 = arith.constant 5 : index
    %c0_43 = arith.constant 0 : index
    %c0_44 = arith.constant 0 : index
    %70 = vector.load %arg3[%c5_42, %c0_43, %c0_44] : memref<8x1x128xf32, #tpu.memory_space<vmem>>, vector<1x1x128xf32>
    %71 = vector.shape_cast %70 : vector<1x1x128xf32> to vector<1x128xf32>
    %72 = vector.broadcast %71 : vector<1x128xf32> to vector<16x128xf32>
    %73 = arith.addf %69, %72 : vector<16x128xf32>
    %cst_45 = arith.constant 2.000000e-01 : f32
    %74 = vector.broadcast %cst_45 : f32 to vector<16x128xf32>
    %75 = arith.mulf %74, %73 : vector<16x128xf32>
    %76 = arith.maximumf %73, %75 : vector<16x128xf32>
    %77 = arith.truncf %76 : vector<16x128xf32> to vector<16x128xbf16>
    %c6 = arith.constant 6 : index
    %c0_46 = arith.constant 0 : index
    %c0_47 = arith.constant 0 : index
    %78 = vector.load %arg2[%c6, %c0_46, %c0_47] : memref<8x128x128xbf16, #tpu.memory_space<vmem>>, vector<1x128x128xbf16>
    %79 = vector.shape_cast %78 : vector<1x128x128xbf16> to vector<128x128xbf16>
    %cst_48 = arith.constant dense<0.000000e+00> : vector<16x128xf32>
    %80 = tpu.matmul %77, %79, %cst_48 {dimension_numbers = #tpu.dot_dimension_numbers<[1], [0], [0], [1], [0, 0, 1, 1], [], []>} : vector<16x128xbf16>, vector<128x128xbf16>, vector<16x128xf32> -> vector<16x128xf32>
    %c6_49 = arith.constant 6 : index
    %c0_50 = arith.constant 0 : index
    %c0_51 = arith.constant 0 : index
    %81 = vector.load %arg3[%c6_49, %c0_50, %c0_51] : memref<8x1x128xf32, #tpu.memory_space<vmem>>, vector<1x1x128xf32>
    %82 = vector.shape_cast %81 : vector<1x1x128xf32> to vector<1x128xf32>
    %83 = vector.broadcast %82 : vector<1x128xf32> to vector<16x128xf32>
    %84 = arith.addf %80, %83 : vector<16x128xf32>
    %cst_52 = arith.constant 2.000000e-01 : f32
    %85 = vector.broadcast %cst_52 : f32 to vector<16x128xf32>
    %86 = arith.mulf %85, %84 : vector<16x128xf32>
    %87 = arith.maximumf %84, %86 : vector<16x128xf32>
    %88 = arith.truncf %87 : vector<16x128xf32> to vector<16x128xbf16>
    %c7 = arith.constant 7 : index
    %c0_53 = arith.constant 0 : index
    %c0_54 = arith.constant 0 : index
    %89 = vector.load %arg2[%c7, %c0_53, %c0_54] : memref<8x128x128xbf16, #tpu.memory_space<vmem>>, vector<1x128x128xbf16>
    %90 = vector.shape_cast %89 : vector<1x128x128xbf16> to vector<128x128xbf16>
    %cst_55 = arith.constant dense<0.000000e+00> : vector<16x128xf32>
    %91 = tpu.matmul %88, %90, %cst_55 {dimension_numbers = #tpu.dot_dimension_numbers<[1], [0], [0], [1], [0, 0, 1, 1], [], []>} : vector<16x128xbf16>, vector<128x128xbf16>, vector<16x128xf32> -> vector<16x128xf32>
    %c7_56 = arith.constant 7 : index
    %c0_57 = arith.constant 0 : index
    %c0_58 = arith.constant 0 : index
    %92 = vector.load %arg3[%c7_56, %c0_57, %c0_58] : memref<8x1x128xf32, #tpu.memory_space<vmem>>, vector<1x1x128xf32>
    %93 = vector.shape_cast %92 : vector<1x1x128xf32> to vector<1x128xf32>
    %94 = vector.broadcast %93 : vector<1x128xf32> to vector<16x128xf32>
    %95 = arith.addf %91, %94 : vector<16x128xf32>
    %cst_59 = arith.constant 2.000000e-01 : f32
    %96 = vector.broadcast %cst_59 : f32 to vector<16x128xf32>
    %97 = arith.mulf %96, %95 : vector<16x128xf32>
    %98 = arith.maximumf %95, %97 : vector<16x128xf32>
    %c0_60 = arith.constant 0 : index
    %c0_61 = arith.constant 0 : index
    %99 = vector.load %arg4[%c0_60, %c0_61] : memref<16x128xf32, #tpu.memory_space<vmem>>, vector<16x128xf32>
    tpu.vector_store %arg4[%c0_60, %c0_61], %98 {strides = array<i32>} : memref<16x128xf32, #tpu.memory_space<vmem>>, vector<16x128xf32>,
    return
  }
  func.func @transform_0(%arg0: i32) -> (i32, i32) {
    %c0_i32 = arith.constant 0 : i32
    %c0_i32_0 = arith.constant 0 : i32
    return %arg0, %c0_i32 : i32, i32
  }
  func.func @transform_1(%arg0: i32) -> (i32, i32, i32) {
    %c0_i32 = arith.constant 0 : i32
    %c0_i32_0 = arith.constant 0 : i32
    %c0_i32_1 = arith.constant 0 : i32
    %c0_i32_2 = arith.constant 0 : i32
    return %c0_i32, %c0_i32_0, %c0_i32_1 : i32, i32, i32
  }
  func.func @transform_2(%arg0: i32) -> (i32, i32, i32) {
    %c0_i32 = arith.constant 0 : i32
    %c0_i32_0 = arith.constant 0 : i32
    %c0_i32_1 = arith.constant 0 : i32
    %c0_i32_2 = arith.constant 0 : i32
    return %c0_i32, %c0_i32_0, %c0_i32_1 : i32, i32, i32
  }
  func.func @transform_3(%arg0: i32) -> (i32, i32) {
    %c0_i32 = arith.constant 0 : i32
    %c0_i32_0 = arith.constant 0 : i32
    return %arg0, %c0_i32 : i32, i32
  }
}

</mosaic_0001>

<llo_original>
// kernel: tpu_custom_call.1
$region0: #{tpu_custom_call.1}
  #allocation0 [shape = 'u32[]', space=smem, size = 0x4, offset = 0x4, fixed_abs, tag = 'smem constant byte address 0x4 - core index']
  #allocation1 [shape = 'u32[144,128]{1,0:T(1,128)}', space=vmem, size = 0x12000, scoped, tag = 'internal scratch']
  %s0 = inlined_call_operand.hbm [shape: f32[16,128], index: 0, kind: input, shape index: {}]
  %s1 = inlined_call_operand.hbm [shape: bf16[8,128,128], index: 1, kind: input, shape index: {}]
  %s2 = inlined_call_operand.hbm [shape: f32[8,1,128], index: 2, kind: input, shape index: {}]
  %s3 = inlined_call_operand.hbm [shape: f32[16,128], index: 3, kind: output, shape index: {}]
  %s4 = sld [smem:[#allocation0]]
  $region34: #{tpu_custom_call.1} parent=0
    _
  %s6 = ssub.s32 1, %s4
  %s7 = scalar_select 0, %s6, %s4
  $region1: #{tpu_custom_call.1} parent=0
    #allocation2 [shape = 'u8[8192]{0}', space=vmem, size = 0x2000, scoped, tag = 'input window, operand 0, single buffered']
    #allocation3 [shape = 's32[1]{0}', space=sflag, size = 0x4, scoped, tag = 'scoped memory for tpu_custom_call.1']
    #allocation4 [shape = 's32[1]{0}', space=sflag, size = 0x4, scoped, tag = 'scoped memory for tpu_custom_call.1']
    #allocation5 [shape = 'u8[262144]{0}', space=vmem, size = 0x40000, scoped, tag = 'input window, operand 1, single buffered']
    #allocation6 [shape = 's32[1]{0}', space=sflag, size = 0x4, scoped, tag = 'scoped memory for tpu_custom_call.1']
    #allocation7 [shape = 'u8[4096]{0}', space=vmem, size = 0x1000, scoped, tag = 'input window, operand 2, single buffered']
    #allocation8 [shape = 'u8[8192]{0}', space=vmem, size = 0x2000, scoped, tag = 'output window, operand 0, single buffered']
    %8 = vsyncpa [#allocation3], 0
    %9 = vsyncpa [#allocation6], 0
    %10 = vsyncpa [#allocation4], 0
    // Predicated region
    $region2: #{tpu_custom_call.1} parent=1 // pred_check
      _
    $region3: #{tpu_custom_call.1} parent=1 // pred_check_branch
      %12 = sbr.rel (0) target = $region5
    $region4: #{tpu_custom_call.1} parent=1 // pred_region
      %s14 = ssub.s32 256, 256
      %15 = vsyncadd [#allocation3], %s14
      %s16 = sshll.u32 [#allocation2], 4
      %s17 = int_to_ptr.vmem [resolvable:$true] %s16
      %22 = dma.hbm_to_vmem [thread:$0]  %s0, 256, %s17, [#allocation3], 128, 128, 8
    $region5: #{tpu_custom_call.1} parent=1 // pred_fallthru
      _
    // Predicated region
    $region6: #{tpu_custom_call.1} parent=1 // pred_check
      _
    $region7: #{tpu_custom_call.1} parent=1 // pred_check_branch
      %24 = sbr.rel (0) target = $region9
    $region8: #{tpu_custom_call.1} parent=1 // pred_region
      %s26 = ssub.s32 8192, 8192
      %27 = vsyncadd [#allocation6], %s26
      %s28 = sshll.u32 [#allocation5], 4
      %s29 = int_to_ptr.vmem [resolvable:$true] %s28
      %34 = dma.hbm_to_vmem [thread:$0]  %s1, 8192, %s29, [#allocation6], 64, 64, 4
    $region9: #{tpu_custom_call.1} parent=1 // pred_fallthru
      _
    // Predicated region
    $region10: #{tpu_custom_call.1} parent=1 // pred_check
      _
    $region11: #{tpu_custom_call.1} parent=1 // pred_check_branch
      %36 = sbr.rel (0) target = $region13
    $region12: #{tpu_custom_call.1} parent=1 // pred_region
      %s38 = ssub.s32 128, 128
      %39 = vsyncadd [#allocation6], %s38
      %s40 = sshll.u32 [#allocation7], 4
      %s41 = int_to_ptr.vmem [resolvable:$true] %s40
      %46 = dma.hbm_to_vmem [thread:$0]  %s2, 128, %s41, [#allocation6], 16, 16, 1
    $region13: #{tpu_custom_call.1} parent=1 // pred_fallthru
      _
    // Predicated region
    $region14: #{tpu_custom_call.1} parent=1 // pred_check
      _
    $region15: #{tpu_custom_call.1} parent=1 // pred_check_branch
      %48 = sbr.rel (0) target = $region17
    $region16: #{tpu_custom_call.1} parent=1 // pred_region
      %49 = dma.done [#allocation3], 256
    $region17: #{tpu_custom_call.1} parent=1 // pred_fallthru
      _
    // Predicated region
    $region18: #{tpu_custom_call.1} parent=1 // pred_check
      _
    $region19: #{tpu_custom_call.1} parent=1 // pred_check_branch
      %51 = sbr.rel (0) target = $region21
    $region20: #{tpu_custom_call.1} parent=1 // pred_region
      %52 = dma.done [#allocation6], 8192
    $region21: #{tpu_custom_call.1} parent=1 // pred_fallthru
      _
    // Predicated region
    $region22: #{tpu_custom_call.1} parent=1 // pred_check
      _
    $region23: #{tpu_custom_call.1} parent=1 // pred_check_branch
      %54 = sbr.rel (0) target = $region25
    $region24: #{tpu_custom_call.1} parent=1 // pred_region
      %55 = dma.done [#allocation6], 128
    $region25: #{tpu_custom_call.1} parent=1 // pred_fallthru
      _
    %v57 = vld [vmem:[#allocation2] sm:$0xff]
    %v58 = vld [vmem:[#allocation2 + $0x8] sm:$0xff]
    %v59 = vmul.f32 %v57, %v57
    %v60 = vmul.f32 %v58, %v58
    %61 = vadd.xlane.f32.xlu0 %v59
    %v62 = vpop.xlane.xlu0 %61
    %63 = vadd.xlane.f32.xlu0 %v60
    %v64 = vpop.xlane.xlu0 %63
    %v65 = vrcp.pop 128.0
    %v66 = vmul.f32 %v62, %v65
    %v67 = vmul.f32 %v64, %v65
    %v68 = vadd.f32 %v66, 1e-08
    %v69 = vadd.f32 %v67, 1e-08
    %v70 = vrsqrt.pop %v68
    %v71 = vrsqrt.pop %v69
    %v72 = vmul.f32 %v57, %v70
    %v73 = vmul.f32 %v58, %v71
    %v74 = vpack.c.bf16 %v73, %v72
    %v75 = vld [vmem:[#allocation5] sm:$0xf]
    %v76 = vld [vmem:[#allocation5 + $0x4] sm:$0xf]
    %v77 = vld [vmem:[#allocation5 + $0x8] sm:$0xf]
    %v78 = vld [vmem:[#allocation5 + $0xc] sm:$0xf]
    %v79 = vld [vmem:[#allocation5 + $0x10] sm:$0xf]
    %v80 = vld [vmem:[#allocation5 + $0x14] sm:$0xf]
    %v81 = vld [vmem:[#allocation5 + $0x18] sm:$0xf]
    %v82 = vld [vmem:[#allocation5 + $0x1c] sm:$0xf]
    %v83 = vld [vmem:[#allocation5 + $0x20] sm:$0xf]
    %v84 = vld [vmem:[#allocation5 + $0x24] sm:$0xf]
    %v85 = vld [vmem:[#allocation5 + $0x28] sm:$0xf]
    %v86 = vld [vmem:[#allocation5 + $0x2c] sm:$0xf]
    %v87 = vld [vmem:[#allocation5 + $0x30] sm:$0xf]
    %v88 = vld [vmem:[#allocation5 + $0x34] sm:$0xf]
    %v89 = vld [vmem:[#allocation5 + $0x38] sm:$0xf]
    %v90 = vld [vmem:[#allocation5 + $0x3c] sm:$0xf]
    %v91 = vld [vmem:[#allocation7] sm:$0x1]
    %v93 = vlaneseq
    %v94 = vshrl.u32 %v93, 7
    %v95 = vsub.s32 0, %v94
    %v96 = vrot.slane %v91, %v95
    %v114 = vunpack.c.l.b16 %v75
    %v115 = vunpack.c.l.b16 %v76
    %v116 = vunpack.c.l.b16 %v77
    %v117 = vunpack.c.l.b16 %v78
    %v118 = vunpack.c.l.b16 %v79
    %v119 = vunpack.c.l.b16 %v80
    %v120 = vunpack.c.l.b16 %v81
    %v121 = vunpack.c.l.b16 %v82
    %v122 = vunpack.c.l.b16 %v83
    %v123 = vunpack.c.l.b16 %v84
    %v124 = vunpack.c.l.b16 %v85
    %v125 = vunpack.c.l.b16 %v86
    %v126 = vunpack.c.l.b16 %v87
    %v127 = vunpack.c.l.b16 %v88
    %v128 = vunpack.c.l.b16 %v89
    %v129 = vunpack.c.l.b16 %v90
    %v130 = vpack.c.b16 %v115, %v114
    %v131 = vpack.c.b16 %v117, %v116
    %v132 = vpack.c.b16 %v119, %v118
    %v133 = vpack.c.b16 %v121, %v120
    %v134 = vpack.c.b16 %v123, %v122
    %v135 = vpack.c.b16 %v125, %v124
    %v136 = vpack.c.b16 %v127, %v126
    %v137 = vpack.c.b16 %v129, %v128
    %146 = vmatprep.subr.bf16.mxu0 0
    %147 = vmatpush1.bf16.msra.mxu0 %v130
    %148 = vmatprep.subr.bf16.mxu0 0
    %149 = vmatpush1.bf16.msra.mxu0 %v131
    %150 = vmatprep.subr.bf16.mxu0 0
    %151 = vmatpush1.bf16.msra.mxu0 %v132
    %152 = vmatprep.subr.bf16.mxu0 0
    %153 = vmatpush1.bf16.msra.mxu0 %v133
    %154 = vmatprep.subr.bf16.mxu0 0
    %155 = vmatpush1.bf16.msra.mxu0 %v134
    %156 = vmatprep.subr.bf16.mxu0 0
    %157 = vmatpush1.bf16.msra.mxu0 %v135
    %158 = vmatprep.subr.bf16.mxu0 0
    %159 = vmatpush1.bf16.msra.mxu0 %v136
    %160 = vmatprep.subr.bf16.mxu0 0
    %161 = vmatpush1.bf16.msra.mxu0 %v137
    %162 = vmatprep.subr.bf16.mxu0 0
    %163 = vmatpush1.bf16.msra.mxu0 0
    %164 = vmatprep.subr.bf16.mxu0 0
    %165 = vmatpush1.bf16.msra.mxu0 0
    %166 = vmatprep.subr.bf16.mxu0 0
    %167 = vmatpush1.bf16.msra.mxu0 0
    %168 = vmatprep.subr.bf16.mxu0 0
    %169 = vmatpush1.bf16.msra.mxu0 0
    %170 = vmatprep.subr.bf16.mxu0 0
    %171 = vmatpush1.bf16.msra.mxu0 0
    %172 = vmatprep.subr.bf16.mxu0 0
    %173 = vmatpush1.bf16.msra.mxu0 0
    %174 = vmatprep.subr.bf16.mxu0 0
    %175 = vmatpush1.bf16.msra.mxu0 0
    %176 = vmatprep.subr.bf16.mxu0 0
    %177 = vmatpush1.bf16.msra.mxu0 0
    %178 = vmatprep.mubr.bf16.mxu0 0
    %179 = vmatmul.mubr.bf16.gmra.mrb[0].mxu0 %v74
    %v180 = vpop.f32.mrb[0].mxu0
    %v181 = vadd.f32 %v96, %v180
    %v182 = vpop.f32.mrb[0].mxu0
    %v183 = vpop.f32.mrb[0].mxu0
    %v184 = vadd.f32 %v96, %v183
    %v185 = vpop.f32.mrb[0].mxu0
    %186 = vdwg.mxu0
    %v187 = vmul.f32 %v181, 0.2
    %v188 = vmul.f32 %v184, 0.2
    %v189 = vmax.f32 %v181, %v187
    %v190 = vmax.f32 %v184, %v188
    %v191 = vpack.c.bf16 %v190, %v189
    %s192 = scalar_lea.vmem [#allocation5], 64
    %v193 = vld [vmem:[%s192] sm:$0xf]
    %v194 = vld [vmem:[%s192 + $0x4] sm:$0xf]
    %v195 = vld [vmem:[%s192 + $0x8] sm:$0xf]
    %v196 = vld [vmem:[%s192 + $0xc] sm:$0xf]
    %v197 = vld [vmem:[%s192 + $0x10] sm:$0xf]
    %v198 = vld [vmem:[%s192 + $0x14] sm:$0xf]
    %v199 = vld [vmem:[%s192 + $0x18] sm:$0xf]
    %v200 = vld [vmem:[%s192 + $0x1c] sm:$0xf]
    %v201 = vld [vmem:[%s192 + $0x20] sm:$0xf]
    %v202 = vld [vmem:[%s192 + $0x24] sm:$0xf]
    %v203 = vld [vmem:[%s192 + $0x28] sm:$0xf]
    %v204 = vld [vmem:[%s192 + $0x2c] sm:$0xf]
    %v205 = vld [vmem:[%s192 + $0x30] sm:$0xf]
    %v206 = vld [vmem:[%s192 + $0x34] sm:$0xf]
    %v207 = vld [vmem:[%s192 + $0x38] sm:$0xf]
    %v208 = vld [vmem:[%s192 + $0x3c] sm:$0xf]
    %s209 = scalar_lea.vmem [#allocation7], 1
    %v210 = vld [vmem:[%s209] sm:$0x1]
    %v212 = vlaneseq
    %v213 = vshrl.u32 %v212, 7
    %v214 = vsub.s32 0, %v213
    %v215 = vrot.slane %v210, %v214
    %v233 = vunpack.c.l.b16 %v193
    %v234 = vunpack.c.l.b16 %v194
    %v235 = vunpack.c.l.b16 %v195
    %v236 = vunpack.c.l.b16 %v196
    %v237 = vunpack.c.l.b16 %v197
    %v238 = vunpack.c.l.b16 %v198
    %v239 = vunpack.c.l.b16 %v199
    %v240 = vunpack.c.l.b16 %v200
    %v241 = vunpack.c.l.b16 %v201
    %v242 = vunpack.c.l.b16 %v202
    %v243 = vunpack.c.l.b16 %v203
    %v244 = vunpack.c.l.b16 %v204
    %v245 = vunpack.c.l.b16 %v205
    %v246 = vunpack.c.l.b16 %v206
    %v247 = vunpack.c.l.b16 %v207
    %v248 = vunpack.c.l.b16 %v208
    %v249 = vpack.c.b16 %v234, %v233
    %v250 = vpack.c.b16 %v236, %v235
    %v251 = vpack.c.b16 %v238, %v237
    %v252 = vpack.c.b16 %v240, %v239
    %v253 = vpack.c.b16 %v242, %v241
    %v254 = vpack.c.b16 %v244, %v243
    %v255 = vpack.c.b16 %v246, %v245
    %v256 = vpack.c.b16 %v248, %v247
    %265 = vmatprep.subr.bf16.mxu0 0
    %266 = vmatpush1.bf16.msra.mxu0 %v249
    %267 = vmatprep.subr.bf16.mxu0 0
    %268 = vmatpush1.bf16.msra.mxu0 %v250
    %269 = vmatprep.subr.bf16.mxu0 0
    %270 = vmatpush1.bf16.msra.mxu0 %v251
    %271 = vmatprep.subr.bf16.mxu0 0
    %272 = vmatpush1.bf16.msra.mxu0 %v252
    %273 = vmatprep.subr.bf16.mxu0 0
    %274 = vmatpush1.bf16.msra.mxu0 %v253
    %275 = vmatprep.subr.bf16.mxu0 0
    %276 = vmatpush1.bf16.msra.mxu0 %v254
    %277 = vmatprep.subr.bf16.mxu0 0
    %278 = vmatpush1.bf16.msra.mxu0 %v255
    %279 = vmatprep.subr.bf16.mxu0 0
    %280 = vmatpush1.bf16.msra.mxu0 %v256
    %281 = vmatprep.subr.bf16.mxu0 0
    %282 = vmatpush1.bf16.msra.mxu0 0
    %283 = vmatprep.subr.bf16.mxu0 0
    %284 = vmatpush1.bf16.msra.mxu0 0
    %285 = vmatprep.subr.bf16.mxu0 0
    %286 = vmatpush1.bf16.msra.mxu0 0
    %287 = vmatprep.subr.bf16.mxu0 0
    %288 = vmatpush1.bf16.msra.mxu0 0
    %289 = vmatprep.subr.bf16.mxu0 0
    %290 = vmatpush1.bf16.msra.mxu0 0
    %291 = vmatprep.subr.bf16.mxu0 0
    %292 = vmatpush1.bf16.msra.mxu0 0
    %293 = vmatprep.subr.bf16.mxu0 0
    %294 = vmatpush1.bf16.msra.mxu0 0
    %295 = vmatprep.subr.bf16.mxu0 0
    %296 = vmatpush1.bf16.msra.mxu0 0
    %297 = vmatprep.mubr.bf16.mxu0 0
    %298 = vmatmul.mubr.bf16.gmra.mrb[0].mxu0 %v191
    %v299 = vpop.f32.mrb[0].mxu0
    %v300 = vadd.f32 %v215, %v299
    %v301 = vpop.f32.mrb[0].mxu0
    %v302 = vpop.f32.mrb[0].mxu0
    %v303 = vadd.f32 %v215, %v302
    %v304 = vpop.f32.mrb[0].mxu0
    %305 = vdwg.mxu0
    %v306 = vmul.f32 %v300, 0.2
    %v307 = vmul.f32 %v303, 0.2
    %v308 = vmax.f32 %v300, %v306
    %v309 = vmax.f32 %v303, %v307
    %v310 = vpack.c.bf16 %v309, %v308
    %s311 = scalar_lea.vmem [#allocation5], 128
    %v312 = vld [vmem:[%s311] sm:$0xf]
    %v313 = vld [vmem:[%s311 + $0x4] sm:$0xf]
    %v314 = vld [vmem:[%s311 + $0x8] sm:$0xf]
    %v315 = vld [vmem:[%s311 + $0xc] sm:$0xf]
    %v316 = vld [vmem:[%s311 + $0x10] sm:$0xf]
    %v317 = vld [vmem:[%s311 + $0x14] sm:$0xf]
    %v318 = vld [vmem:[%s311 + $0x18] sm:$0xf]
    %v319 = vld [vmem:[%s311 + $0x1c] sm:$0xf]
    %v320 = vld [vmem:[%s311 + $0x20] sm:$0xf]
    %v321 = vld [vmem:[%s311 + $0x24] sm:$0xf]
    %v322 = vld [vmem:[%s311 + $0x28] sm:$0xf]
    %v323 = vld [vmem:[%s311 + $0x2c] sm:$0xf]
    %v324 = vld [vmem:[%s311 + $0x30] sm:$0xf]
    %v325 = vld [vmem:[%s311 + $0x34] sm:$0xf]
    %v326 = vld [vmem:[%s311 + $0x38] sm:$0xf]
    %v327 = vld [vmem:[%s311 + $0x3c] sm:$0xf]
    %s328 = scalar_lea.vmem [#allocation7], 2
    %v329 = vld [vmem:[%s328] sm:$0x1]
    %v331 = vlaneseq
    %v332 = vshrl.u32 %v331, 7
    %v333 = vsub.s32 0, %v332
    %v334 = vrot.slane %v329, %v333
    %v352 = vunpack.c.l.b16 %v312
    %v353 = vunpack.c.l.b16 %v313
    %v354 = vunpack.c.l.b16 %v314
    %v355 = vunpack.c.l.b16 %v315
    %v356 = vunpack.c.l.b16 %v316
    %v357 = vunpack.c.l.b16 %v317
    %v358 = vunpack.c.l.b16 %v318
    %v359 = vunpack.c.l.b16 %v319
    %v360 = vunpack.c.l.b16 %v320
    %v361 = vunpack.c.l.b16 %v321
    %v362 = vunpack.c.l.b16 %v322
    %v363 = vunpack.c.l.b16 %v323
    %v364 = vunpack.c.l.b16 %v324
    %v365 = vunpack.c.l.b16 %v325
    %v366 = vunpack.c.l.b16 %v326
    %v367 = vunpack.c.l.b16 %v327
    %v368 = vpack.c.b16 %v353, %v352
    %v369 = vpack.c.b16 %v355, %v354
    %v370 = vpack.c.b16 %v357, %v356
    %v371 = vpack.c.b16 %v359, %v358
    %v372 = vpack.c.b16 %v361, %v360
    %v373 = vpack.c.b16 %v363, %v362
    %v374 = vpack.c.b16 %v365, %v364
    %v375 = vpack.c.b16 %v367, %v366
    %384 = vmatprep.subr.bf16.mxu0 0
    %385 = vmatpush1.bf16.msra.mxu0 %v368
    %386 = vmatprep.subr.bf16.mxu0 0
    %387 = vmatpush1.bf16.msra.mxu0 %v369
    %388 = vmatprep.subr.bf16.mxu0 0
    %389 = vmatpush1.bf16.msra.mxu0 %v370
    %390 = vmatprep.subr.bf16.mxu0 0
    %391 = vmatpush1.bf16.msra.mxu0 %v371
    %392 = vmatprep.subr.bf16.mxu0 0
    %393 = vmatpush1.bf16.msra.mxu0 %v372
    %394 = vmatprep.subr.bf16.mxu0 0
    %395 = vmatpush1.bf16.msra.mxu0 %v373
    %396 = vmatprep.subr.bf16.mxu0 0
    %397 = vmatpush1.bf16.msra.mxu0 %v374
    %398 = vmatprep.subr.bf16.mxu0 0
    %399 = vmatpush1.bf16.msra.mxu0 %v375
    %400 = vmatprep.subr.bf16.mxu0 0
    %401 = vmatpush1.bf16.msra.mxu0 0
    %402 = vmatprep.subr.bf16.mxu0 0
    %403 = vmatpush1.bf16.msra.mxu0 0
    %404 = vmatprep.subr.bf16.mxu0 0
    %405 = vmatpush1.bf16.msra.mxu0 0
    %406 = vmatprep.subr.bf16.mxu0 0
    %407 = vmatpush1.bf16.msra.mxu0 0
    %408 = vmatprep.subr.bf16.mxu0 0
    %409 = vmatpush1.bf16.msra.mxu0 0
    %410 = vmatprep.subr.bf16.mxu0 0
    %411 = vmatpush1.bf16.msra.mxu0 0
    %412 = vmatprep.subr.bf16.mxu0 0
    %413 = vmatpush1.bf16.msra.mxu0 0
    %414 = vmatprep.subr.bf16.mxu0 0
    %415 = vmatpush1.bf16.msra.mxu0 0
    %416 = vmatprep.mubr.bf16.mxu0 0
    %417 = vmatmul.mubr.bf16.gmra.mrb[0].mxu0 %v310
    %v418 = vpop.f32.mrb[0].mxu0
    %v419 = vadd.f32 %v334, %v418
    %v420 = vpop.f32.mrb[0].mxu0
    %v421 = vpop.f32.mrb[0].mxu0
    %v422 = vadd.f32 %v334, %v421
    %v423 = vpop.f32.mrb[0].mxu0
    %424 = vdwg.mxu0
    %v425 = vmul.f32 %v419, 0.2
    %v426 = vmul.f32 %v422, 0.2
    %v427 = vmax.f32 %v419, %v425
    %v428 = vmax.f32 %v422, %v426
    %v429 = vpack.c.bf16 %v428, %v427
    %s430 = scalar_lea.vmem [#allocation5], 192
    %v431 = vld [vmem:[%s430] sm:$0xf]
    %v432 = vld [vmem:[%s430 + $0x4] sm:$0xf]
    %v433 = vld [vmem:[%s430 + $0x8] sm:$0xf]
    %v434 = vld [vmem:[%s430 + $0xc] sm:$0xf]
    %v435 = vld [vmem:[%s430 + $0x10] sm:$0xf]
    %v436 = vld [vmem:[%s430 + $0x14] sm:$0xf]
    %v437 = vld [vmem:[%s430 + $0x18] sm:$0xf]
    %v438 = vld [vmem:[%s430 + $0x1c] sm:$0xf]
    %v439 = vld [vmem:[%s430 + $0x20] sm:$0xf]
    %v440 = vld [vmem:[%s430 + $0x24] sm:$0xf]
    %v441 = vld [vmem:[%s430 + $0x28] sm:$0xf]
    %v442 = vld [vmem:[%s430 + $0x2c] sm:$0xf]
    %v443 = vld [vmem:[%s430 + $0x30] sm:$0xf]
    %v444 = vld [vmem:[%s430 + $0x34] sm:$0xf]
    %v445 = vld [vmem:[%s430 + $0x38] sm:$0xf]
    %v446 = vld [vmem:[%s430 + $0x3c] sm:$0xf]
    %s447 = scalar_lea.vmem [#allocation7], 3
    %v448 = vld [vmem:[%s447] sm:$0x1]
    %v450 = vlaneseq
    %v451 = vshrl.u32 %v450, 7
    %v452 = vsub.s32 0, %v451
    %v453 = vrot.slane %v448, %v452
    %v471 = vunpack.c.l.b16 %v431
    %v472 = vunpack.c.l.b16 %v432
    %v473 = vunpack.c.l.b16 %v433
    %v474 = vunpack.c.l.b16 %v434
    %v475 = vunpack.c.l.b16 %v435
    %v476 = vunpack.c.l.b16 %v436
    %v477 = vunpack.c.l.b16 %v437
    %v478 = vunpack.c.l.b16 %v438
    %v479 = vunpack.c.l.b16 %v439
    %v480 = vunpack.c.l.b16 %v440
    %v481 = vunpack.c.l.b16 %v441
    %v482 = vunpack.c.l.b16 %v442
    %v483 = vunpack.c.l.b16 %v443
    %v484 = vunpack.c.l.b16 %v444
    %v485 = vunpack.c.l.b16 %v445
    %v486 = vunpack.c.l.b16 %v446
    %v487 = vpack.c.b16 %v472, %v471
    %v488 = vpack.c.b16 %v474, %v473
    %v489 = vpack.c.b16 %v476, %v475
    %v490 = vpack.c.b16 %v478, %v477
    %v491 = vpack.c.b16 %v480, %v479
    %v492 = vpack.c.b16 %v482, %v481
    %v493 = vpack.c.b16 %v484, %v483
    %v494 = vpack.c.b16 %v486, %v485
    %503 = vmatprep.subr.bf16.mxu0 0
    %504 = vmatpush1.bf16.msra.mxu0 %v487
    %505 = vmatprep.subr.bf16.mxu0 0
    %506 = vmatpush1.bf16.msra.mxu0 %v488
    %507 = vmatprep.subr.bf16.mxu0 0
    %508 = vmatpush1.bf16.msra.mxu0 %v489
    %509 = vmatprep.subr.bf16.mxu0 0
    %510 = vmatpush1.bf16.msra.mxu0 %v490
    %511 = vmatprep.subr.bf16.mxu0 0
    %512 = vmatpush1.bf16.msra.mxu0 %v491
    %513 = vmatprep.subr.bf16.mxu0 0
    %514 = vmatpush1.bf16.msra.mxu0 %v492
    %515 = vmatprep.subr.bf16.mxu0 0
    %516 = vmatpush1.bf16.msra.mxu0 %v493
    %517 = vmatprep.subr.bf16.mxu0 0
    %518 = vmatpush1.bf16.msra.mxu0 %v494
    %519 = vmatprep.subr.bf16.mxu0 0
    %520 = vmatpush1.bf16.msra.mxu0 0
    %521 = vmatprep.subr.bf16.mxu0 0
    %522 = vmatpush1.bf16.msra.mxu0 0
    %523 = vmatprep.subr.bf16.mxu0 0
    %524 = vmatpush1.bf16.msra.mxu0 0
    %525 = vmatprep.subr.bf16.mxu0 0
    %526 = vmatpush1.bf16.msra.mxu0 0
    %527 = vmatprep.subr.bf16.mxu0 0
    %528 = vmatpush1.bf16.msra.mxu0 0
    %529 = vmatprep.subr.bf16.mxu0 0
    %530 = vmatpush1.bf16.msra.mxu0 0
    %531 = vmatprep.subr.bf16.mxu0 0
    %532 = vmatpush1.bf16.msra.mxu0 0
    %533 = vmatprep.subr.bf16.mxu0 0
    %534 = vmatpush1.bf16.msra.mxu0 0
    %535 = vmatprep.mubr.bf16.mxu0 0
    %536 = vmatmul.mubr.bf16.gmra.mrb[0].mxu0 %v429
    %v537 = vpop.f32.mrb[0].mxu0
    %v538 = vadd.f32 %v453, %v537
    %v539 = vpop.f32.mrb[0].mxu0
    %v540 = vpop.f32.mrb[0].mxu0
    %v541 = vadd.f32 %v453, %v540
    %v542 = vpop.f32.mrb[0].mxu0
    %543 = vdwg.mxu0
    %v544 = vmul.f32 %v538, 0.2
    %v545 = vmul.f32 %v541, 0.2
    %v546 = vmax.f32 %v538, %v544
    %v547 = vmax.f32 %v541, %v545
    %v548 = vpack.c.bf16 %v547, %v546
    %s549 = scalar_lea.vmem [#allocation5], 256
    %v550 = vld [vmem:[%s549] sm:$0xf]
    %v551 = vld [vmem:[%s549 + $0x4] sm:$0xf]
    %v552 = vld [vmem:[%s549 + $0x8] sm:$0xf]
    %v553 = vld [vmem:[%s549 + $0xc] sm:$0xf]
    %v554 = vld [vmem:[%s549 + $0x10] sm:$0xf]
    %v555 = vld [vmem:[%s549 + $0x14] sm:$0xf]
    %v556 = vld [vmem:[%s549 + $0x18] sm:$0xf]
    %v557 = vld [vmem:[%s549 + $0x1c] sm:$0xf]
    %v558 = vld [vmem:[%s549 + $0x20] sm:$0xf]
    %v559 = vld [vmem:[%s549 + $0x24] sm:$0xf]
    %v560 = vld [vmem:[%s549 + $0x28] sm:$0xf]
    %v561 = vld [vmem:[%s549 + $0x2c] sm:$0xf]
    %v562 = vld [vmem:[%s549 + $0x30] sm:$0xf]
    %v563 = vld [vmem:[%s549 + $0x34] sm:$0xf]
    %v564 = vld [vmem:[%s549 + $0x38] sm:$0xf]
    %v565 = vld [vmem:[%s549 + $0x3c] sm:$0xf]
    %s566 = scalar_lea.vmem [#allocation7], 4
    %v567 = vld [vmem:[%s566] sm:$0x1]
    %v569 = vlaneseq
    %v570 = vshrl.u32 %v569, 7
    %v571 = vsub.s32 0, %v570
    %v572 = vrot.slane %v567, %v571
    %v590 = vunpack.c.l.b16 %v550
    %v591 = vunpack.c.l.b16 %v551
    %v592 = vunpack.c.l.b16 %v552
    %v593 = vunpack.c.l.b16 %v553
    %v594 = vunpack.c.l.b16 %v554
    %v595 = vunpack.c.l.b16 %v555
    %v596 = vunpack.c.l.b16 %v556
    %v597 = vunpack.c.l.b16 %v557
    %v598 = vunpack.c.l.b16 %v558
    %v599 = vunpack.c.l.b16 %v559
    %v600 = vunpack.c.l.b16 %v560
    %v601 = vunpack.c.l.b16 %v561
    %v602 = vunpack.c.l.b16 %v562
    %v603 = vunpack.c.l.b16 %v563
    %v604 = vunpack.c.l.b16 %v564
    %v605 = vunpack.c.l.b16 %v565
    %v606 = vpack.c.b16 %v591, %v590
    %v607 = vpack.c.b16 %v593, %v592
    %v608 = vpack.c.b16 %v595, %v594
    %v609 = vpack.c.b16 %v597, %v596
    %v610 = vpack.c.b16 %v599, %v598
    %v611 = vpack.c.b16 %v601, %v600
    %v612 = vpack.c.b16 %v603, %v602
    %v613 = vpack.c.b16 %v605, %v604
    %622 = vmatprep.subr.bf16.mxu0 0
    %623 = vmatpush1.bf16.msra.mxu0 %v606
    %624 = vmatprep.subr.bf16.mxu0 0
    %625 = vmatpush1.bf16.msra.mxu0 %v607
    %626 = vmatprep.subr.bf16.mxu0 0
    %627 = vmatpush1.bf16.msra.mxu0 %v608
    %628 = vmatprep.subr.bf16.mxu0 0
    %629 = vmatpush1.bf16.msra.mxu0 %v609
    %630 = vmatprep.subr.bf16.mxu0 0
    %631 = vmatpush1.bf16.msra.mxu0 %v610
    %632 = vmatprep.subr.bf16.mxu0 0
    %633 = vmatpush1.bf16.msra.mxu0 %v611
    %634 = vmatprep.subr.bf16.mxu0 0
    %635 = vmatpush1.bf16.msra.mxu0 %v612
    %636 = vmatprep.subr.bf16.mxu0 0
    %637 = vmatpush1.bf16.msra.mxu0 %v613
    %638 = vmatprep.subr.bf16.mxu0 0
    %639 = vmatpush1.bf16.msra.mxu0 0
    %640 = vmatprep.subr.bf16.mxu0 0
    %641 = vmatpush1.bf16.msra.mxu0 0
    %642 = vmatprep.subr.bf16.mxu0 0
    %643 = vmatpush1.bf16.msra.mxu0 0
    %644 = vmatprep.subr.bf16.mxu0 0
    %645 = vmatpush1.bf16.msra.mxu0 0
    %646 = vmatprep.subr.bf16.mxu0 0
    %647 = vmatpush1.bf16.msra.mxu0 0
    %648 = vmatprep.subr.bf16.mxu0 0
    %649 = vmatpush1.bf16.msra.mxu0 0
    %650 = vmatprep.subr.bf16.mxu0 0
    %651 = vmatpush1.bf16.msra.mxu0 0
    %652 = vmatprep.subr.bf16.mxu0 0
    %653 = vmatpush1.bf16.msra.mxu0 0
    %654 = vmatprep.mubr.bf16.mxu0 0
    %655 = vmatmul.mubr.bf16.gmra.mrb[0].mxu0 %v548
    %v656 = vpop.f32.mrb[0].mxu0
    %v657 = vadd.f32 %v572, %v656
    %v658 = vpop.f32.mrb[0].mxu0
    %v659 = vpop.f32.mrb[0].mxu0
    %v660 = vadd.f32 %v572, %v659
    %v661 = vpop.f32.mrb[0].mxu0
    %662 = vdwg.mxu0
    %v663 = vmul.f32 %v657, 0.2
    %v664 = vmul.f32 %v660, 0.2
    %v665 = vmax.f32 %v657, %v663
    %v666 = vmax.f32 %v660, %v664
    %v667 = vpack.c.bf16 %v666, %v665
    %s668 = scalar_lea.vmem [#allocation5], 320
    %v669 = vld [vmem:[%s668] sm:$0xf]
    %v670 = vld [vmem:[%s668 + $0x4] sm:$0xf]
    %v671 = vld [vmem:[%s668 + $0x8] sm:$0xf]
    %v672 = vld [vmem:[%s668 + $0xc] sm:$0xf]
    %v673 = vld [vmem:[%s668 + $0x10] sm:$0xf]
    %v674 = vld [vmem:[%s668 + $0x14] sm:$0xf]
    %v675 = vld [vmem:[%s668 + $0x18] sm:$0xf]
    %v676 = vld [vmem:[%s668 + $0x1c] sm:$0xf]
    %v677 = vld [vmem:[%s668 + $0x20] sm:$0xf]
    %v678 = vld [vmem:[%s668 + $0x24] sm:$0xf]
    %v679 = vld [vmem:[%s668 + $0x28] sm:$0xf]
    %v680 = vld [vmem:[%s668 + $0x2c] sm:$0xf]
    %v681 = vld [vmem:[%s668 + $0x30] sm:$0xf]
    %v682 = vld [vmem:[%s668 + $0x34] sm:$0xf]
    %v683 = vld [vmem:[%s668 + $0x38] sm:$0xf]
    %v684 = vld [vmem:[%s668 + $0x3c] sm:$0xf]
    %s685 = scalar_lea.vmem [#allocation7], 5
    %v686 = vld [vmem:[%s685] sm:$0x1]
    %v688 = vlaneseq
    %v689 = vshrl.u32 %v688, 7
    %v690 = vsub.s32 0, %v689
    %v691 = vrot.slane %v686, %v690
    %v709 = vunpack.c.l.b16 %v669
    %v710 = vunpack.c.l.b16 %v670
    %v711 = vunpack.c.l.b16 %v671
    %v712 = vunpack.c.l.b16 %v672
    %v713 = vunpack.c.l.b16 %v673
    %v714 = vunpack.c.l.b16 %v674
    %v715 = vunpack.c.l.b16 %v675
    %v716 = vunpack.c.l.b16 %v676
    %v717 = vunpack.c.l.b16 %v677
    %v718 = vunpack.c.l.b16 %v678
    %v719 = vunpack.c.l.b16 %v679
    %v720 = vunpack.c.l.b16 %v680
    %v721 = vunpack.c.l.b16 %v681
    %v722 = vunpack.c.l.b16 %v682
    %v723 = vunpack.c.l.b16 %v683
    %v724 = vunpack.c.l.b16 %v684
    %v725 = vpack.c.b16 %v710, %v709
    %v726 = vpack.c.b16 %v712, %v711
    %v727 = vpack.c.b16 %v714, %v713
    %v728 = vpack.c.b16 %v716, %v715
    %v729 = vpack.c.b16 %v718, %v717
    %v730 = vpack.c.b16 %v720, %v719
    %v731 = vpack.c.b16 %v722, %v721
    %v732 = vpack.c.b16 %v724, %v723
    %741 = vmatprep.subr.bf16.mxu0 0
    %742 = vmatpush1.bf16.msra.mxu0 %v725
    %743 = vmatprep.subr.bf16.mxu0 0
    %744 = vmatpush1.bf16.msra.mxu0 %v726
    %745 = vmatprep.subr.bf16.mxu0 0
    %746 = vmatpush1.bf16.msra.mxu0 %v727
    %747 = vmatprep.subr.bf16.mxu0 0
    %748 = vmatpush1.bf16.msra.mxu0 %v728
    %749 = vmatprep.subr.bf16.mxu0 0
    %750 = vmatpush1.bf16.msra.mxu0 %v729
    %751 = vmatprep.subr.bf16.mxu0 0
    %752 = vmatpush1.bf16.msra.mxu0 %v730
    %753 = vmatprep.subr.bf16.mxu0 0
    %754 = vmatpush1.bf16.msra.mxu0 %v731
    %755 = vmatprep.subr.bf16.mxu0 0
    %756 = vmatpush1.bf16.msra.mxu0 %v732
    %757 = vmatprep.subr.bf16.mxu0 0
    %758 = vmatpush1.bf16.msra.mxu0 0
    %759 = vmatprep.subr.bf16.mxu0 0
    %760 = vmatpush1.bf16.msra.mxu0 0
    %761 = vmatprep.subr.bf16.mxu0 0
    %762 = vmatpush1.bf16.msra.mxu0 0
    %763 = vmatprep.subr.bf16.mxu0 0
    %764 = vmatpush1.bf16.msra.mxu0 0
    %765 = vmatprep.subr.bf16.mxu0 0
    %766 = vmatpush1.bf16.msra.mxu0 0
    %767 = vmatprep.subr.bf16.mxu0 0
    %768 = vmatpush1.bf16.msra.mxu0 0
    %769 = vmatprep.subr.bf16.mxu0 0
    %770 = vmatpush1.bf16.msra.mxu0 0
    %771 = vmatprep.subr.bf16.mxu0 0
    %772 = vmatpush1.bf16.msra.mxu0 0
    %773 = vmatprep.mubr.bf16.mxu0 0
    %774 = vmatmul.mubr.bf16.gmra.mrb[0].mxu0 %v667
    %v775 = vpop.f32.mrb[0].mxu0
    %v776 = vadd.f32 %v691, %v775
    %v777 = vpop.f32.mrb[0].mxu0
    %v778 = vpop.f32.mrb[0].mxu0
    %v779 = vadd.f32 %v691, %v778
    %v780 = vpop.f32.mrb[0].mxu0
    %781 = vdwg.mxu0
    %v782 = vmul.f32 %v776, 0.2
    %v783 = vmul.f32 %v779, 0.2
    %v784 = vmax.f32 %v776, %v782
    %v785 = vmax.f32 %v779, %v783
    %v786 = vpack.c.bf16 %v785, %v784
    %s787 = scalar_lea.vmem [#allocation5], 384
    %v788 = vld [vmem:[%s787] sm:$0xf]
    %v789 = vld [vmem:[%s787 + $0x4] sm:$0xf]
    %v790 = vld [vmem:[%s787 + $0x8] sm:$0xf]
    %v791 = vld [vmem:[%s787 + $0xc] sm:$0xf]
    %v792 = vld [vmem:[%s787 + $0x10] sm:$0xf]
    %v793 = vld [vmem:[%s787 + $0x14] sm:$0xf]
    %v794 = vld [vmem:[%s787 + $0x18] sm:$0xf]
    %v795 = vld [vmem:[%s787 + $0x1c] sm:$0xf]
    %v796 = vld [vmem:[%s787 + $0x20] sm:$0xf]
    %v797 = vld [vmem:[%s787 + $0x24] sm:$0xf]
    %v798 = vld [vmem:[%s787 + $0x28] sm:$0xf]
    %v799 = vld [vmem:[%s787 + $0x2c] sm:$0xf]
    %v800 = vld [vmem:[%s787 + $0x30] sm:$0xf]
    %v801 = vld [vmem:[%s787 + $0x34] sm:$0xf]
    %v802 = vld [vmem:[%s787 + $0x38] sm:$0xf]
    %v803 = vld [vmem:[%s787 + $0x3c] sm:$0xf]
    %s804 = scalar_lea.vmem [#allocation7], 6
    %v805 = vld [vmem:[%s804] sm:$0x1]
    %v807 = vlaneseq
    %v808 = vshrl.u32 %v807, 7
    %v809 = vsub.s32 0, %v808
    %v810 = vrot.slane %v805, %v809
    %v828 = vunpack.c.l.b16 %v788
    %v829 = vunpack.c.l.b16 %v789
    %v830 = vunpack.c.l.b16 %v790
    %v831 = vunpack.c.l.b16 %v791
    %v832 = vunpack.c.l.b16 %v792
    %v833 = vunpack.c.l.b16 %v793
    %v834 = vunpack.c.l.b16 %v794
    %v835 = vunpack.c.l.b16 %v795
    %v836 = vunpack.c.l.b16 %v796
    %v837 = vunpack.c.l.b16 %v797
    %v838 = vunpack.c.l.b16 %v798
    %v839 = vunpack.c.l.b16 %v799
    %v840 = vunpack.c.l.b16 %v800
    %v841 = vunpack.c.l.b16 %v801
    %v842 = vunpack.c.l.b16 %v802
    %v843 = vunpack.c.l.b16 %v803
    %v844 = vpack.c.b16 %v829, %v828
    %v845 = vpack.c.b16 %v831, %v830
    %v846 = vpack.c.b16 %v833, %v832
    %v847 = vpack.c.b16 %v835, %v834
    %v848 = vpack.c.b16 %v837, %v836
    %v849 = vpack.c.b16 %v839, %v838
    %v850 = vpack.c.b16 %v841, %v840
    %v851 = vpack.c.b16 %v843, %v842
    %860 = vmatprep.subr.bf16.mxu0 0
    %861 = vmatpush1.bf16.msra.mxu0 %v844
    %862 = vmatprep.subr.bf16.mxu0 0
    %863 = vmatpush1.bf16.msra.mxu0 %v845
    %864 = vmatprep.subr.bf16.mxu0 0
    %865 = vmatpush1.bf16.msra.mxu0 %v846
    %866 = vmatprep.subr.bf16.mxu0 0
    %867 = vmatpush1.bf16.msra.mxu0 %v847
    %868 = vmatprep.subr.bf16.mxu0 0
    %869 = vmatpush1.bf16.msra.mxu0 %v848
    %870 = vmatprep.subr.bf16.mxu0 0
    %871 = vmatpush1.bf16.msra.mxu0 %v849
    %872 = vmatprep.subr.bf16.mxu0 0
    %873 = vmatpush1.bf16.msra.mxu0 %v850
    %874 = vmatprep.subr.bf16.mxu0 0
    %875 = vmatpush1.bf16.msra.mxu0 %v851
    %876 = vmatprep.subr.bf16.mxu0 0
    %877 = vmatpush1.bf16.msra.mxu0 0
    %878 = vmatprep.subr.bf16.mxu0 0
    %879 = vmatpush1.bf16.msra.mxu0 0
    %880 = vmatprep.subr.bf16.mxu0 0
    %881 = vmatpush1.bf16.msra.mxu0 0
    %882 = vmatprep.subr.bf16.mxu0 0
    %883 = vmatpush1.bf16.msra.mxu0 0
    %884 = vmatprep.subr.bf16.mxu0 0
    %885 = vmatpush1.bf16.msra.mxu0 0
    %886 = vmatprep.subr.bf16.mxu0 0
    %887 = vmatpush1.bf16.msra.mxu0 0
    %888 = vmatprep.subr.bf16.mxu0 0
    %889 = vmatpush1.bf16.msra.mxu0 0
    %890 = vmatprep.subr.bf16.mxu0 0
    %891 = vmatpush1.bf16.msra.mxu0 0
    %892 = vmatprep.mubr.bf16.mxu0 0
    %893 = vmatmul.mubr.bf16.gmra.mrb[0].mxu0 %v786
    %v894 = vpop.f32.mrb[0].mxu0
    %v895 = vadd.f32 %v810, %v894
    %v896 = vpop.f32.mrb[0].mxu0
    %v897 = vpop.f32.mrb[0].mxu0
    %v898 = vadd.f32 %v810, %v897
    %v899 = vpop.f32.mrb[0].mxu0
    %900 = vdwg.mxu0
    %v901 = vmul.f32 %v895, 0.2
    %v902 = vmul.f32 %v898, 0.2
    %v903 = vmax.f32 %v895, %v901
    %v904 = vmax.f32 %v898, %v902
    %v905 = vpack.c.bf16 %v904, %v903
    %s906 = scalar_lea.vmem [#allocation5], 448
    %v907 = vld [vmem:[%s906] sm:$0xf]
    %v908 = vld [vmem:[%s906 + $0x4] sm:$0xf]
    %v909 = vld [vmem:[%s906 + $0x8] sm:$0xf]
    %v910 = vld [vmem:[%s906 + $0xc] sm:$0xf]
    %v911 = vld [vmem:[%s906 + $0x10] sm:$0xf]
    %v912 = vld [vmem:[%s906 + $0x14] sm:$0xf]
    %v913 = vld [vmem:[%s906 + $0x18] sm:$0xf]
    %v914 = vld [vmem:[%s906 + $0x1c] sm:$0xf]
    %v915 = vld [vmem:[%s906 + $0x20] sm:$0xf]
    %v916 = vld [vmem:[%s906 + $0x24] sm:$0xf]
    %v917 = vld [vmem:[%s906 + $0x28] sm:$0xf]
    %v918 = vld [vmem:[%s906 + $0x2c] sm:$0xf]
    %v919 = vld [vmem:[%s906 + $0x30] sm:$0xf]
    %v920 = vld [vmem:[%s906 + $0x34] sm:$0xf]
    %v921 = vld [vmem:[%s906 + $0x38] sm:$0xf]
    %v922 = vld [vmem:[%s906 + $0x3c] sm:$0xf]
    %s923 = scalar_lea.vmem [#allocation7], 7
    %v924 = vld [vmem:[%s923] sm:$0x1]
    %v926 = vlaneseq
    %v927 = vshrl.u32 %v926, 7
    %v928 = vsub.s32 0, %v927
    %v929 = vrot.slane %v924, %v928
    %v947 = vunpack.c.l.b16 %v907
    %v948 = vunpack.c.l.b16 %v908
    %v949 = vunpack.c.l.b16 %v909
    %v950 = vunpack.c.l.b16 %v910
    %v951 = vunpack.c.l.b16 %v911
    %v952 = vunpack.c.l.b16 %v912
    %v953 = vunpack.c.l.b16 %v913
    %v954 = vunpack.c.l.b16 %v914
    %v955 = vunpack.c.l.b16 %v915
    %v956 = vunpack.c.l.b16 %v916
    %v957 = vunpack.c.l.b16 %v917
    %v958 = vunpack.c.l.b16 %v918
    %v959 = vunpack.c.l.b16 %v919
    %v960 = vunpack.c.l.b16 %v920
    %v961 = vunpack.c.l.b16 %v921
    %v962 = vunpack.c.l.b16 %v922
    %v963 = vpack.c.b16 %v948, %v947
    %v964 = vpack.c.b16 %v950, %v949
    %v965 = vpack.c.b16 %v952, %v951
    %v966 = vpack.c.b16 %v954, %v953
    %v967 = vpack.c.b16 %v956, %v955
    %v968 = vpack.c.b16 %v958, %v957
    %v969 = vpack.c.b16 %v960, %v959
    %v970 = vpack.c.b16 %v962, %v961
    %979 = vmatprep.subr.bf16.mxu0 0
    %980 = vmatpush1.bf16.msra.mxu0 %v963
    %981 = vmatprep.subr.bf16.mxu0 0
    %982 = vmatpush1.bf16.msra.mxu0 %v964
    %983 = vmatprep.subr.bf16.mxu0 0
    %984 = vmatpush1.bf16.msra.mxu0 %v965
    %985 = vmatprep.subr.bf16.mxu0 0
    %986 = vmatpush1.bf16.msra.mxu0 %v966
    %987 = vmatprep.subr.bf16.mxu0 0
    %988 = vmatpush1.bf16.msra.mxu0 %v967
    %989 = vmatprep.subr.bf16.mxu0 0
    %990 = vmatpush1.bf16.msra.mxu0 %v968
    %991 = vmatprep.subr.bf16.mxu0 0
    %992 = vmatpush1.bf16.msra.mxu0 %v969
    %993 = vmatprep.subr.bf16.mxu0 0
    %994 = vmatpush1.bf16.msra.mxu0 %v970
    %995 = vmatprep.subr.bf16.mxu0 0
    %996 = vmatpush1.bf16.msra.mxu0 0
    %997 = vmatprep.subr.bf16.mxu0 0
    %998 = vmatpush1.bf16.msra.mxu0 0
    %999 = vmatprep.subr.bf16.mxu0 0
    %1000 = vmatpush1.bf16.msra.mxu0 0
    %1001 = vmatprep.subr.bf16.mxu0 0
    %1002 = vmatpush1.bf16.msra.mxu0 0
    %1003 = vmatprep.subr.bf16.mxu0 0
    %1004 = vmatpush1.bf16.msra.mxu0 0
    %1005 = vmatprep.subr.bf16.mxu0 0
    %1006 = vmatpush1.bf16.msra.mxu0 0
    %1007 = vmatprep.subr.bf16.mxu0 0
    %1008 = vmatpush1.bf16.msra.mxu0 0
    %1009 = vmatprep.subr.bf16.mxu0 0
    %1010 = vmatpush1.bf16.msra.mxu0 0
    %1011 = vmatprep.mubr.bf16.mxu0 0
    %1012 = vmatmul.mubr.bf16.gmra.mrb[0].mxu0 %v905
    %v1013 = vpop.f32.mrb[0].mxu0
    %v1014 = vadd.f32 %v929, %v1013
    %v1015 = vpop.f32.mrb[0].mxu0
    %v1016 = vpop.f32.mrb[0].mxu0
    %v1017 = vadd.f32 %v929, %v1016
    %v1018 = vpop.f32.mrb[0].mxu0
    %1019 = vdwg.mxu0
    %v1020 = vmul.f32 %v1014, 0.2
    %v1021 = vmul.f32 %v1017, 0.2
    %v1022 = vmax.f32 %v1014, %v1020
    %v1023 = vmax.f32 %v1017, %v1021
    %1024 = vst [vmem:[#allocation8] sm:$0xff] %v1022
    %1025 = vst [vmem:[#allocation8 + $0x8] sm:$0xff] %v1023
    // Predicated region
    $region26: #{tpu_custom_call.1} parent=1 // pred_check
      _
    $region27: #{tpu_custom_call.1} parent=1 // pred_check_branch
      %1027 = sbr.rel (0) target = $region29
    $region28: #{tpu_custom_call.1} parent=1 // pred_region
      %s1029 = ssub.s32 256, 256
      %1030 = vsyncadd [#allocation4], %s1029
      %s1031 = sshll.u32 [#allocation8], 4
      %s1032 = int_to_ptr.vmem [resolvable:$true] %s1031
      %1037 = dma.vmem_to_hbm [thread:$0]  %s1032, 256, %s3, [#allocation4], 128, 128, 8
    $region29: #{tpu_custom_call.1} parent=1 // pred_fallthru
      _
    // Predicated region
    $region30: #{tpu_custom_call.1} parent=1 // pred_check
      _
    $region31: #{tpu_custom_call.1} parent=1 // pred_check_branch
      %1039 = sbr.rel (0) target = $region33
    $region32: #{tpu_custom_call.1} parent=1 // pred_region
      %1040 = dma.done [#allocation4], 256
    $region33: #{tpu_custom_call.1} parent=1 // pred_fallthru
      _
    %1041 = vsyncpa [#allocation3], 1
    %1042 = vsyncpa [#allocation6], 1
    %1043 = vsyncpa [#allocation4], 1

</llo_original>
